<compile_context>
chip_gen: v6e
topology: v6e:2x2x1
jax: 0.10.0
libtpu: 0.0.40
codegen_flags: <defaults>
</compile_context>

<pallas_src>
import math

import jax
import jax.numpy as jnp
from jax.experimental import pallas as pl
from jax.experimental.pallas import tpu as pltpu


def make_positional_encoding(embedding_dim: int, max_len: int = 512) -> jnp.ndarray:
    """Deterministic buffer identical to the PyTorch __init__ (shape (1, max_len, D))."""
    numerator = jnp.arange(max_len, dtype=jnp.float32).reshape(-1, 1)          # (max_len, 1)
    reciprocal_denominator = jnp.exp(
        jnp.arange(0, embedding_dim, 2, dtype=jnp.float32)
        * (-math.log(10000.0) / embedding_dim)
    )                                                                           # (D/2,)
    grid = numerator * reciprocal_denominator                                   # (max_len, D/2)
    pe = jnp.zeros((max_len, embedding_dim), dtype=jnp.float32)
    pe = pe.at[:, 0::2].set(jnp.sin(grid))
    pe = pe.at[:, 1::2].set(jnp.cos(grid))
    return pe[None, :, :]                                                       # (1, max_len, D)


def _add_pe_kernel(x_ref, pe_ref, o_ref):
    # x_ref : (bt, lt) tile of the flattened (B, S*D) input (x dtype)
    # pe_ref: (1, lt)  tile of the flattened (1, S*D) table (f32), broadcast
    #         over the sublane (batch) axis of the block.
    # Add in f32 (PyTorch promotion semantics), single downcast at the store.
    o_ref[...] = (x_ref[...].astype(jnp.float32) + pe_ref[...]).astype(o_ref.dtype)


def _round_down(n: int, m: int) -> int:
    return (n // m) * m


def _hw_params():
    """Return (per-array block byte cap, physical VMEM bytes, min parallel grid iters)."""
    kind = ""
    try:
        kind = str(getattr(jax.devices()[0], "device_kind", "")).lower()
    except Exception:
        pass
    vmem_cap = 128 << 20
    try:
        info = pltpu.get_tpu_info()
        vmem_cap = int(getattr(info, "vmem_capacity_bytes", vmem_cap))
    except Exception:
        pass
    is_v5e = ("v5 lite" in kind) or ("v5e" in kind) or ("v5lite" in kind)
    # v7x: 64 MiB VMEM per TensorCore and 2 TensorCores per chip.
    is_v7x = ("v7" in kind) or (vmem_cap <= (64 << 20))
    if is_v5e:
        block_cap = 3 << 20   # keep 4x block under the 16 MiB default scoped VMEM
    elif is_v7x:
        block_cap = 6 << 20   # 64 MiB physical VMEM: total live buffering stays well under
    else:
        block_cap = 7 << 20   # v6e-class: 128 MiB VMEM, big blocks amortize ~0.35us/step
    min_parallel = 4 if is_v7x else 1
    return block_cap, vmem_cap, min_parallel


def positional_encoding_forward(
    x: jnp.ndarray,
    pe: jnp.ndarray,
    out_dtype=None,
    donate_x: bool = False,
) -> jnp.ndarray:
    """x: (B, S, D); pe: (1, max_len, D) float32.  Returns pe[:, :S, :] + x.

    out_dtype defaults to jnp.promote_types(x.dtype, pe.dtype), matching the
    PyTorch module's type promotion (f32 buffer + x).
    """
    B, S, D = x.shape
    if S > pe.shape[1]:
        raise ValueError(f"sequence length {S} exceeds max_len {pe.shape[1]}")
    if D != pe.shape[2]:
        raise ValueError(f"embedding dim mismatch: x has {D}, pe has {pe.shape[2]}")

    pe = pe.astype(jnp.float32)
    if out_dtype is None:
        out_dtype = jnp.promote_types(x.dtype, pe.dtype)
    out_dtype = jnp.dtype(out_dtype)

    L = S * D
    x2 = x.reshape(B, L)                                  # lane-dense flattened input
    pe2 = pe[:, :S, :].reshape(1, L)                      # (1, S*D) f32

    x_it = x2.dtype.itemsize
    o_it = out_dtype.itemsize

    block_cap, vmem_cap, min_parallel = _hw_params()

    # ---- lane tile: fixed 128-aligned tile, cdiv grid (no divisor cliff) ----
    lt_cap = 32768
    if L <= lt_cap:
        lt = L                                            # full lane extent (always legal)
    else:
        lt = lt_cap                                       # multiple of 128; last block masked
    n_lane_blocks = pl.cdiv(L, lt)

    # ---- batch (sublane) tile: dtype-aware packing unit, VMEM-budgeted ----
    unit = 32 // min(x_it, o_it)                          # 8 (f32) / 16 (bf16) / 32 (int8)
    per_row_max = lt * max(x_it, o_it)                    # bytes per row of the larger block
    bt_cap = max(unit, block_cap // per_row_max)

    # v7x: make sure both TensorCores get "parallel" iterations.
    if n_lane_blocks < min_parallel:
        needed_batch_blocks = -(-min_parallel // n_lane_blocks)
        bt_cap = min(bt_cap, max(unit, B // needed_batch_blocks))

    bt = _round_down(min(bt_cap, B), unit)
    if bt == 0:
        bt = B                                            # B smaller than one packed sublane tile
    n_batch_blocks = pl.cdiv(B, bt)

    # ---- VMEM limit: double-buffered x + out blocks + pe tile, vs. physical ----
    live = 2 * bt * lt * (x_it + o_it) + 2 * lt * 4
    vmem_limit = min(max(live + (4 << 20), 16 << 20), int(vmem_cap * 0.7))
    vmem_limit = max(vmem_limit, live + (1 << 20))
    vmem_limit = int(min(vmem_limit, vmem_cap))

    # Lane tiles outer, batch tiles inner: pe's block index depends only on the
    # lane-tile index, so its block is not re-DMA'd across the inner batch loop.
    grid = (n_lane_blocks, n_batch_blocks)

    extra_kwargs = {}
    if donate_x and x2.dtype == out_dtype:
        # Alias x -> out (footprint win; real gain when x is donated under jit).
        extra_kwargs["input_output_aliases"] = {0: 0}

    out2 = pl.pallas_call(
        _add_pe_kernel,
        out_shape=jax.ShapeDtypeStruct((B, L), out_dtype),
        grid_spec=pltpu.PrefetchScalarGridSpec(
            num_scalar_prefetch=0,
            grid=grid,
            in_specs=[
                pl.BlockSpec((bt, lt), lambda l, b: (b, l)),   # x tile
                pl.BlockSpec((1, lt), lambda l, b: (0, l)),    # pe tile (batch-invariant)
            ],
            out_specs=pl.BlockSpec((bt, lt), lambda l, b: (b, l)),
        ),
        compiler_params=pltpu.CompilerParams(
            dimension_semantics=("parallel", "parallel"),
            vmem_limit_bytes=vmem_limit,
        ),
        **extra_kwargs,
    )(x2, pe2)

    return out2.reshape(B, S, D)


if __name__ == "__main__":
    embedding_dim = 32
    max_len = 512
    batch = 2
    seq = 8

    pe = make_positional_encoding(embedding_dim, max_len)

    key = jax.random.PRNGKey(0)
    x = jax.random.normal(key, (batch, seq, embedding_dim), dtype=jnp.float32)

    out = positional_encoding_forward(x, pe)
    out = jax.block_until_ready(out)

    # Reference check (plain JAX) -- same semantics as the PyTorch forward.
    ref = pe[:, :seq, :] + x
    assert out.shape == (batch, seq, embedding_dim)
    assert out.dtype == jnp.float32
    assert jnp.allclose(out, ref, atol=1e-6), "mismatch vs reference (f32)"

    # bf16 path: add performed in f32 inside the kernel (PyTorch promotion),
    # so the result is f32 and matches the jnp reference exactly.
    x_bf16 = x.astype(jnp.bfloat16)
    out_bf16 = jax.block_until_ready(positional_encoding_forward(x_bf16, pe))
    ref_bf16 = pe[:, :seq, :] + x_bf16       # jnp promotion: bf16 + f32 -> f32
    assert out_bf16.dtype == jnp.float32
    assert jnp.allclose(out_bf16, ref_bf16, atol=1e-6), "mismatch vs reference (bf16 input)"

    # Optional bf16 output path (single rounding at the store).
    out_bf16_o = jax.block_until_ready(
        positional_encoding_forward(x_bf16, pe, out_dtype=jnp.bfloat16)
    )
    assert out_bf16_o.dtype == jnp.bfloat16
    assert jnp.allclose(
        out_bf16_o.astype(jnp.float32), ref_bf16, atol=1e-2
    ), "mismatch vs reference (bf16 output)"

    print("KERNEL_OK")
</pallas_src>

<mosaic_0001>
module attributes {stable_mosaic.version = 11 : i64} {
  func.func @_add_pe_kernel(%arg0: i32, %arg1: i32, %arg2: memref<2x256xf32, #tpu.memory_space<vmem>>, %arg3: memref<1x256xf32, #tpu.memory_space<vmem>>, %arg4: memref<2x256xf32, #tpu.memory_space<vmem>>) attributes {dimension_semantics = [#tpu.dimension_semantics<parallel>, #tpu.dimension_semantics<parallel>], iteration_bounds = array<i64: 1, 1>, scalar_prefetch = 0 : i64, scratch_operands = 0 : i64, tpu.core_type = #tpu.core_type<tc>, window_params = [{transform_indices = @transform_0, window_bounds = array<i64: 2, 256>}, {transform_indices = @transform_1, window_bounds = array<i64: 1, 256>}, {transform_indices = @transform_2, window_bounds = array<i64: 2, 256>}]} {
    %c0 = arith.constant 0 : index
    %c0_0 = arith.constant 0 : index
    %0 = vector.load %arg2[%c0, %c0_0] : memref<2x256xf32, #tpu.memory_space<vmem>>, vector<2x256xf32>
    %c0_1 = arith.constant 0 : index
    %c0_2 = arith.constant 0 : index
    %1 = vector.load %arg3[%c0_1, %c0_2] : memref<1x256xf32, #tpu.memory_space<vmem>>, vector<1x256xf32>
    %2 = vector.broadcast %1 : vector<1x256xf32> to vector<2x256xf32>
    %3 = arith.addf %0, %2 : vector<2x256xf32>
    %c0_3 = arith.constant 0 : index
    %c0_4 = arith.constant 0 : index
    %4 = vector.load %arg4[%c0_3, %c0_4] : memref<2x256xf32, #tpu.memory_space<vmem>>, vector<2x256xf32>
    tpu.vector_store %arg4[%c0_3, %c0_4], %3 {strides = array<i32>} : memref<2x256xf32, #tpu.memory_space<vmem>>, vector<2x256xf32>,
    return
  }
  func.func @transform_0(%arg0: i32, %arg1: i32) -> (i32, i32) {
    %c0_i32 = arith.constant 0 : i32
    return %arg1, %arg0 : i32, i32
  }
  func.func @transform_1(%arg0: i32, %arg1: i32) -> (i32, i32) {
    %c0_i32 = arith.constant 0 : i32
    %c0_i32_0 = arith.constant 0 : i32
    return %c0_i32, %arg0 : i32, i32
  }
  func.func @transform_2(%arg0: i32, %arg1: i32) -> (i32, i32) {
    %c0_i32 = arith.constant 0 : i32
    return %arg1, %arg0 : i32, i32
  }
}

</mosaic_0001>

<llo_original>
// kernel: tpu_custom_call.1
$region0: #{tpu_custom_call.1}
  #allocation0 [shape = 'u32[]', space=smem, size = 0x4, offset = 0x4, fixed_abs, tag = 'smem constant byte address 0x4 - core index']
  #allocation1 [shape = 'u32[144,128]{1,0:T(1,128)}', space=vmem, size = 0x12000, scoped, tag = 'internal scratch']
  %s0 = inlined_call_operand.hbm [shape: f32[2,256], index: 0, kind: input, shape index: {}]
  %s1 = inlined_call_operand.hbm [shape: f32[1,256], index: 1, kind: input, shape index: {}]
  %s2 = inlined_call_operand.hbm [shape: f32[2,256], index: 2, kind: output, shape index: {}]
  %s3 = sld [smem:[#allocation0]]
  $region26: #{tpu_custom_call.1} parent=0
    _
  %s5 = ssub.s32 1, %s3
  %s6 = scalar_select 0, %s5, %s3
  $region1: #{tpu_custom_call.1} parent=0
    #allocation2 [shape = 'u8[2048]{0}', space=vmem, size = 0x800, scoped, tag = 'input window, operand 0, single buffered']
    #allocation3 [shape = 's32[1]{0}', space=sflag, size = 0x4, scoped, tag = 'scoped memory for tpu_custom_call.1']
    #allocation4 [shape = 's32[1]{0}', space=sflag, size = 0x4, scoped, tag = 'scoped memory for tpu_custom_call.1']
    #allocation5 [shape = 'u8[1024]{0}', space=vmem, size = 0x400, scoped, tag = 'input window, operand 1, single buffered']
    #allocation6 [shape = 's32[1]{0}', space=sflag, size = 0x4, scoped, tag = 'scoped memory for tpu_custom_call.1']
    #allocation7 [shape = 'u8[2048]{0}', space=vmem, size = 0x800, scoped, tag = 'output window, operand 0, single buffered']
    %7 = vsyncpa [#allocation3], 0
    %8 = vsyncpa [#allocation6], 0
    %9 = vsyncpa [#allocation4], 0
    // Predicated region
    $region2: #{tpu_custom_call.1} parent=1 // pred_check
      _
    $region3: #{tpu_custom_call.1} parent=1 // pred_check_branch
      %11 = sbr.rel (0) target = $region5
    $region4: #{tpu_custom_call.1} parent=1 // pred_region
      %s13 = ssub.s32 64, 64
      %14 = vsyncadd [#allocation3], %s13
      %s16 = sshll.u32 [#allocation2], 4
      %s17 = int_to_ptr.vmem [resolvable:$true] %s16
      %19 = dma.hbm_to_vmem [thread:$0]  %s0, 64, %s17, [#allocation3]
    $region5: #{tpu_custom_call.1} parent=1 // pred_fallthru
      _
    // Predicated region
    $region6: #{tpu_custom_call.1} parent=1 // pred_check
      _
    $region7: #{tpu_custom_call.1} parent=1 // pred_check_branch
      %21 = sbr.rel (0) target = $region9
    $region8: #{tpu_custom_call.1} parent=1 // pred_region
      %s23 = ssub.s32 32, 32
      %24 = vsyncadd [#allocation6], %s23
      %s26 = sshll.u32 [#allocation5], 4
      %s27 = int_to_ptr.vmem [resolvable:$true] %s26
      %29 = dma.hbm_to_vmem [thread:$0]  %s1, 32, %s27, [#allocation6]
    $region9: #{tpu_custom_call.1} parent=1 // pred_fallthru
      _
    // Predicated region
    $region10: #{tpu_custom_call.1} parent=1 // pred_check
      _
    $region11: #{tpu_custom_call.1} parent=1 // pred_check_branch
      %31 = sbr.rel (0) target = $region13
    $region12: #{tpu_custom_call.1} parent=1 // pred_region
      %32 = dma.done [#allocation3], 64
    $region13: #{tpu_custom_call.1} parent=1 // pred_fallthru
      _
    // Predicated region
    $region14: #{tpu_custom_call.1} parent=1 // pred_check
      _
    $region15: #{tpu_custom_call.1} parent=1 // pred_check_branch
      %34 = sbr.rel (0) target = $region17
    $region16: #{tpu_custom_call.1} parent=1 // pred_region
      %35 = dma.done [#allocation6], 32
    $region17: #{tpu_custom_call.1} parent=1 // pred_fallthru
      _
    %v36 = vld [vmem:[#allocation2] sm:$0xf]
    %v37 = vld [vmem:[#allocation5] sm:$0x3]
    %v39 = vlaneseq
    %v40 = vshrl.u32 %v39, 7
    %v41 = vsub.s32 0, %v40
    %v42 = vrot.slane %v37, %v41
    %v43 = vlaneseq
    %v44 = vshrl.u32 %v43, 7
    %v45 = vsub.s32 1, %v44
    %v46 = vrot.slane %v37, %v45
    %v47 = vcombine.low %v42, %v46
    %v49 = vunpack.c.l.s4 1983009808
    %v50 = vunpack.c.0.s8 %v49
    %v51 = vlaneseq
    %v52 = vshrl.u32 %v51, 7
    %v53 = vsub.s32 %v50, %v52
    %v54 = vrot.slane %v47, %v53
    %v56 = vadd.f32 %v36, %v54
    %57 = vst [vmem:[#allocation7] sm:$0xf] %v56
    // Predicated region
    $region18: #{tpu_custom_call.1} parent=1 // pred_check
      _
    $region19: #{tpu_custom_call.1} parent=1 // pred_check_branch
      %59 = sbr.rel (0) target = $region21
    $region20: #{tpu_custom_call.1} parent=1 // pred_region
      %s61 = ssub.s32 64, 64
      %62 = vsyncadd [#allocation4], %s61
      %s64 = sshll.u32 [#allocation7], 4
      %s65 = int_to_ptr.vmem [resolvable:$true] %s64
      %67 = dma.vmem_to_hbm [thread:$0]  %s65, 64, %s2, [#allocation4]
    $region21: #{tpu_custom_call.1} parent=1 // pred_fallthru
      _
    // Predicated region
    $region22: #{tpu_custom_call.1} parent=1 // pred_check
      _
    $region23: #{tpu_custom_call.1} parent=1 // pred_check_branch
      %69 = sbr.rel (0) target = $region25
    $region24: #{tpu_custom_call.1} parent=1 // pred_region
      %70 = dma.done [#allocation4], 64
    $region25: #{tpu_custom_call.1} parent=1 // pred_fallthru
      _
    %71 = vsyncpa [#allocation3], 1
    %72 = vsyncpa [#allocation6], 1
    %73 = vsyncpa [#allocation4], 1

</llo_original>
